<compile_context>
chip_gen: v7x
topology: tpu7x:2x2x1
jax: 0.10.0
libtpu: 0.0.40
codegen_flags: <defaults>
</compile_context>

<pallas_src>
import math

import jax
import jax.numpy as jnp
from jax.experimental import pallas as pl
from jax.experimental.pallas import tpu as pltpu

_LANE = 128


def _round_up(x, m):
    return ((x + m - 1) // m) * m


def _make_kernel(nb, hp, h_out, k, lane_k, stride, activation):
    """Kernel factory; all shape parameters are baked in as Python constants."""

    def kernel(x_ref, rhs_ref, shift_ref, alpha_ref, o_ref, lhs_scratch):
        # x_ref:       (nb, hp, lane_k)        padded NHWC input, f32
        # rhs_ref:     (k*lane_k, ncol_pad)    block-Toeplitz weights (BN scale folded)
        # shift_ref:   (1, ncol_pad)           BN shift + conv bias, tiled over Wout
        # alpha_ref:   (1, 1)                  PReLU / LeakyReLU negative slope
        # o_ref:       (nb*h_out, ncol_pad)    lane-dense output tile
        # lhs_scratch: (nb*h_out, k*lane_k)    in-VMEM im2col (never touches HBM)
        for b in range(nb):
            for kh in range(k):
                if stride == 1:
                    tap = x_ref[b, kh:kh + h_out, :]
                else:
                    tap = x_ref[b, kh:kh + (h_out - 1) * stride + 1:stride, :]
                lhs_scratch[b * h_out:(b + 1) * h_out,
                            kh * lane_k:(kh + 1) * lane_k] = tap.astype(
                                lhs_scratch.dtype)

        y = jnp.dot(lhs_scratch[...], rhs_ref[...],
                    preferred_element_type=jnp.float32)
        y = y + shift_ref[...]
        if activation in ("prelu", "leakyrelu"):
            y = jnp.where(y > 0, y, alpha_ref[...] * y)
        elif activation == "tanh":
            y = jnp.tanh(y)
        o_ref[...] = y.astype(o_ref.dtype)

    return kernel


def make_conv_block_forward(weight, bias, bn_gamma, bn_beta, bn_mean, bn_var,
                            *, in_h, in_w, stride=1, batch_norm=True,
                            activation="prelu", prelu_alpha=0.25, eps=1e-5,
                            use_bf16=False, channels_last_output=False):
    """One-time init: fold BN, build block-Toeplitz RHS + shift tile, and return
    a forward(x_nchw) callable. Equivalent to ConvolutionalBlock(...) in eval
    mode for activation in {'prelu', 'leakyrelu', 'tanh', None}."""
    f32 = jnp.float32
    cout, cin, k, _ = weight.shape
    pad = k // 2                                  # matches nn.Conv2d(padding=k//2)
    h_out = (in_h + 2 * pad - k) // stride + 1
    w_out = (in_w + 2 * pad - k) // stride + 1
    hp, wp = in_h + 2 * pad, in_w + 2 * pad

    weight = weight.astype(f32)
    bias = bias.astype(f32)
    if batch_norm:
        inv_std = 1.0 / jnp.sqrt(bn_var.astype(f32) + eps)
        scale = bn_gamma.astype(f32) * inv_std                       # (Cout,)
        shift = bn_beta.astype(f32) + (bias - bn_mean.astype(f32)) * scale
    else:
        scale = jnp.ones((cout,), f32)
        shift = bias

    # --- block-Toeplitz RHS (width taps folded into output columns), built ONCE
    # R[kh, wpi*Cin+ci, wo*Cout+co] = w[co,ci,kh,wpi-wo*stride]*scale[co] (if valid)
    w_hwio = jnp.transpose(weight, (2, 3, 1, 0)) * scale[None, None, None, :]
    kw_idx = jnp.arange(wp)[:, None] - stride * jnp.arange(w_out)[None, :]
    valid = (kw_idx >= 0) & (kw_idx < k)
    kw_safe = jnp.clip(kw_idx, 0, k - 1)
    toe = w_hwio[:, kw_safe, :, :]                     # (k, Wp, Wout, Cin, Cout)
    toe = jnp.where(valid[None, :, :, None, None], toe, 0.0)
    rhs = jnp.transpose(toe, (0, 1, 3, 2, 4)).reshape(k, wp * cin, w_out * cout)

    lane_k = _round_up(wp * cin, _LANE)                # lane-dense contraction
    ncol = w_out * cout
    ncol_pad = _round_up(ncol, _LANE)                  # lane-dense output columns
    rhs = jnp.pad(rhs, ((0, 0), (0, lane_k - wp * cin), (0, ncol_pad - ncol)))
    rhs = rhs.reshape(k * lane_k, ncol_pad)

    shift_tile = jnp.tile(shift, (w_out,)).reshape(1, ncol)
    if ncol_pad != ncol:
        shift_tile = jnp.pad(shift_tile, ((0, 0), (0, ncol_pad - ncol)))

    if activation == "prelu":
        alpha_val = float(prelu_alpha)
    elif activation == "leakyrelu":
        alpha_val = 0.2
    else:
        alpha_val = 1.0
    alpha = jnp.full((1, 1), alpha_val, f32)

    compute_dtype = jnp.bfloat16 if use_bf16 else f32
    rhs = rhs.astype(compute_dtype)
    rhs = jax.block_until_ready(rhs)                   # materialize prep at init
    shift_tile = jax.block_until_ready(shift_tile)
    alpha = jax.block_until_ready(alpha)

    def forward(x_nchw):
        n = x_nchw.shape[0]
        assert x_nchw.shape[1:] == (cin, in_h, in_w), x_nchw.shape

        # Small input layout pass (fuses in XLA): NHWC + spatial pad + lane pad.
        x_nhwc = jnp.transpose(x_nchw, (0, 2, 3, 1))
        x_p = jnp.pad(x_nhwc, ((0, 0), (pad, pad), (pad, pad), (0, 0)))
        x_p = x_p.reshape(n, hp, wp * cin).astype(f32)
        if lane_k != wp * cin:
            x_p = jnp.pad(x_p, ((0, 0), (0, 0), (0, lane_k - wp * cin)))

        # Batch tiling: a single grid step for small problems; once N*Hout grows,
        # a parallel 1-D grid (2 TCs on v7x) with VMEM-sized tiles.
        max_rows = 512
        nb = n
        if n * h_out > max_rows:
            cands = [d for d in range(1, n + 1)
                     if n % d == 0 and d * h_out <= max_rows]
            nb = max(cands) if cands else 1
        grid = (n // nb,)
        m_tile = nb * h_out

        kernel = _make_kernel(nb, hp, h_out, k, lane_k, stride, activation)

        itemsize = jnp.dtype(compute_dtype).itemsize
        cost = pl.CostEstimate(
            flops=2 * n * h_out * (k * lane_k) * ncol_pad,
            transcendentals=(n * h_out * ncol_pad) if activation == "tanh" else 0,
            bytes_accessed=(n * hp * lane_k * 4
                            + (k * lane_k) * ncol_pad * itemsize
                            + ncol_pad * 4 + 4
                            + n * h_out * ncol_pad * jnp.dtype(x_nchw.dtype).itemsize))

        out_flat = pl.pallas_call(
            kernel,
            grid=grid,
            out_shape=jax.ShapeDtypeStruct((n * h_out, ncol_pad), x_nchw.dtype),
            in_specs=[
                pl.BlockSpec((nb, hp, lane_k), lambda i: (i, 0, 0)),        # x tile
                pl.BlockSpec((k * lane_k, ncol_pad), lambda i: (0, 0)),     # rhs (resident)
                pl.BlockSpec((1, ncol_pad), lambda i: (0, 0)),              # shift
                pl.BlockSpec((1, 1), lambda i: (0, 0)),                     # alpha
            ],
            out_specs=pl.BlockSpec((m_tile, ncol_pad), lambda i: (i, 0)),
            scratch_shapes=[pltpu.VMEM((m_tile, k * lane_k), compute_dtype)],
            compiler_params=pltpu.CompilerParams(
                dimension_semantics=("parallel",),
                vmem_limit_bytes=32 * 1024 * 1024),
            cost_estimate=cost,
        )(x_p, rhs, shift_tile, alpha)

        if ncol_pad != ncol:
            out_flat = out_flat[:, :ncol]
        out = out_flat.reshape(n, h_out, w_out, cout)          # NHWC (reshape = free)
        if channels_last_output:
            return out                                          # skip the transpose
        return jnp.transpose(out, (0, 3, 1, 2))                 # module contract: NCHW

    return forward


def _reference(x_nchw, weight, bias, bn_gamma, bn_beta, bn_mean, bn_var,
               prelu_alpha, *, stride=1, eps=1e-5):
    """Pure-JAX reference (lax conv) for the correctness check."""
    k = weight.shape[-1]
    pad = k // 2
    y = jax.lax.conv_general_dilated(
        x_nchw.astype(jnp.float32), weight.astype(jnp.float32),
        window_strides=(stride, stride),
        padding=((pad, pad), (pad, pad)),
        dimension_numbers=("NCHW", "OIHW", "NCHW"))
    y = y + bias.reshape(1, -1, 1, 1)
    inv_std = 1.0 / jnp.sqrt(bn_var + eps)
    y = (y - bn_mean.reshape(1, -1, 1, 1)) * (bn_gamma * inv_std).reshape(
        1, -1, 1, 1) + bn_beta.reshape(1, -1, 1, 1)
    y = jnp.where(y > 0, y, prelu_alpha * y)
    return y.astype(x_nchw.dtype)


if __name__ == "__main__":
    N, CIN, H, W = 2, 4, 16, 16
    COUT, K, STRIDE = 8, 3, 1

    key = jax.random.PRNGKey(0)
    kx, kw, kb = jax.random.split(key, 3)

    x = jax.random.normal(kx, (N, CIN, H, W), jnp.float32)

    fan_in = CIN * K * K
    bound = 1.0 / math.sqrt(fan_in)
    weight = jax.random.uniform(kw, (COUT, CIN, K, K), jnp.float32, -bound, bound)
    bias = jax.random.uniform(kb, (COUT,), jnp.float32, -bound, bound)

    bn_gamma = jnp.ones((COUT,), jnp.float32)
    bn_beta = jnp.zeros((COUT,), jnp.float32)
    bn_mean = jnp.zeros((COUT,), jnp.float32)
    bn_var = jnp.ones((COUT,), jnp.float32)
    prelu_alpha = 0.25

    # "Module init": weight-side prep happens once, outside the forward path.
    fwd = jax.jit(make_conv_block_forward(
        weight, bias, bn_gamma, bn_beta, bn_mean, bn_var,
        in_h=H, in_w=W, stride=STRIDE, batch_norm=True,
        activation="prelu", prelu_alpha=prelu_alpha))

    out = jax.block_until_ready(fwd(x))
    ref = _reference(x, weight, bias, bn_gamma, bn_beta, bn_mean, bn_var,
                     prelu_alpha, stride=STRIDE)
    assert out.shape == (N, COUT, H, W), out.shape
    assert jnp.allclose(out, ref, atol=1e-4, rtol=1e-4), (
        float(jnp.max(jnp.abs(out - ref))))

    # bf16-operand path (fewer MXU passes / less RHS DMA); f32 accumulate keeps
    # the error small, verified at a looser tolerance.
    fwd_bf16 = jax.jit(make_conv_block_forward(
        weight, bias, bn_gamma, bn_beta, bn_mean, bn_var,
        in_h=H, in_w=W, stride=STRIDE, batch_norm=True,
        activation="prelu", prelu_alpha=prelu_alpha, use_bf16=True))
    out_bf16 = jax.block_until_ready(fwd_bf16(x))
    assert jnp.allclose(out_bf16, ref, atol=1e-1, rtol=1e-1), (
        float(jnp.max(jnp.abs(out_bf16 - ref))))

    print("KERNEL_OK")
</pallas_src>

<mosaic_0001>
module attributes {stable_mosaic.version = 11 : i64} {
  func.func @kernel(%arg0: i32, %arg1: memref<2x18x128xf32, #tpu.memory_space<vmem>>, %arg2: memref<384x128xf32, #tpu.memory_space<vmem>>, %arg3: memref<1x128xf32, #tpu.memory_space<vmem>>, %arg4: memref<1x1xf32, #tpu.memory_space<vmem>>, %arg5: memref<32x128xf32, #tpu.memory_space<vmem>>, %arg6: memref<32x384xf32, #tpu.memory_space<vmem>>) attributes {dimension_semantics = [#tpu.dimension_semantics<parallel>], iteration_bounds = array<i64: 1>, scalar_prefetch = 0 : i64, scratch_operands = 1 : i64, tpu.core_type = #tpu.core_type<tc>, window_params = [{transform_indices = @transform_0, window_bounds = array<i64: 2, 18, 128>}, {pipeline_mode = #tpu.pipeline_mode<synchronous>, transform_indices = @transform_1, window_bounds = array<i64: 384, 128>}, {pipeline_mode = #tpu.pipeline_mode<synchronous>, transform_indices = @transform_2, window_bounds = array<i64: 1, 128>}, {pipeline_mode = #tpu.pipeline_mode<synchronous>, transform_indices = @transform_3, window_bounds = array<i64: 1, 1>}, {transform_indices = @transform_4, window_bounds = array<i64: 32, 128>}]} {
    %c0 = arith.constant 0 : index
    %c0_0 = arith.constant 0 : index
    %c0_1 = arith.constant 0 : index
    %0 = vector.load %arg1[%c0, %c0_0, %c0_1] : memref<2x18x128xf32, #tpu.memory_space<vmem>>, vector<1x16x128xf32>
    %1 = vector.shape_cast %0 : vector<1x16x128xf32> to vector<16x128xf32>
    %c0_2 = arith.constant 0 : index
    %c0_3 = arith.constant 0 : index
    %2 = vector.load %arg6[%c0_2, %c0_3] : memref<32x384xf32, #tpu.memory_space<vmem>>, vector<16x128xf32>
    tpu.vector_store %arg6[%c0_2, %c0_3], %1 {strides = array<i32>} : memref<32x384xf32, #tpu.memory_space<vmem>>, vector<16x128xf32>,
    %c0_4 = arith.constant 0 : index
    %c1 = arith.constant 1 : index
    %c0_5 = arith.constant 0 : index
    %3 = vector.load %arg1[%c0_4, %c1, %c0_5] : memref<2x18x128xf32, #tpu.memory_space<vmem>>, vector<1x16x128xf32>
    %4 = vector.shape_cast %3 : vector<1x16x128xf32> to vector<16x128xf32>
    %c0_6 = arith.constant 0 : index
    %c128 = arith.constant 128 : index
    %5 = vector.load %arg6[%c0_6, %c128] : memref<32x384xf32, #tpu.memory_space<vmem>>, vector<16x128xf32>
    tpu.vector_store %arg6[%c0_6, %c128], %4 {strides = array<i32>} : memref<32x384xf32, #tpu.memory_space<vmem>>, vector<16x128xf32>,
    %c0_7 = arith.constant 0 : index
    %c2 = arith.constant 2 : index
    %c0_8 = arith.constant 0 : index
    %6 = vector.load %arg1[%c0_7, %c2, %c0_8] : memref<2x18x128xf32, #tpu.memory_space<vmem>>, vector<1x16x128xf32>
    %7 = vector.shape_cast %6 : vector<1x16x128xf32> to vector<16x128xf32>
    %c0_9 = arith.constant 0 : index
    %c256 = arith.constant 256 : index
    %8 = vector.load %arg6[%c0_9, %c256] : memref<32x384xf32, #tpu.memory_space<vmem>>, vector<16x128xf32>
    tpu.vector_store %arg6[%c0_9, %c256], %7 {strides = array<i32>} : memref<32x384xf32, #tpu.memory_space<vmem>>, vector<16x128xf32>,
    %c1_10 = arith.constant 1 : index
    %c0_11 = arith.constant 0 : index
    %c0_12 = arith.constant 0 : index
    %9 = vector.load %arg1[%c1_10, %c0_11, %c0_12] : memref<2x18x128xf32, #tpu.memory_space<vmem>>, vector<1x16x128xf32>
    %10 = vector.shape_cast %9 : vector<1x16x128xf32> to vector<16x128xf32>
    %c16 = arith.constant 16 : index
    %c0_13 = arith.constant 0 : index
    %11 = vector.load %arg6[%c16, %c0_13] : memref<32x384xf32, #tpu.memory_space<vmem>>, vector<16x128xf32>
    tpu.vector_store %arg6[%c16, %c0_13], %10 {strides = array<i32>} : memref<32x384xf32, #tpu.memory_space<vmem>>, vector<16x128xf32>,
    %c1_14 = arith.constant 1 : index
    %c1_15 = arith.constant 1 : index
    %c0_16 = arith.constant 0 : index
    %12 = vector.load %arg1[%c1_14, %c1_15, %c0_16] : memref<2x18x128xf32, #tpu.memory_space<vmem>>, vector<1x16x128xf32>
    %13 = vector.shape_cast %12 : vector<1x16x128xf32> to vector<16x128xf32>
    %c16_17 = arith.constant 16 : index
    %c128_18 = arith.constant 128 : index
    %14 = vector.load %arg6[%c16_17, %c128_18] : memref<32x384xf32, #tpu.memory_space<vmem>>, vector<16x128xf32>
    tpu.vector_store %arg6[%c16_17, %c128_18], %13 {strides = array<i32>} : memref<32x384xf32, #tpu.memory_space<vmem>>, vector<16x128xf32>,
    %c1_19 = arith.constant 1 : index
    %c2_20 = arith.constant 2 : index
    %c0_21 = arith.constant 0 : index
    %15 = vector.load %arg1[%c1_19, %c2_20, %c0_21] : memref<2x18x128xf32, #tpu.memory_space<vmem>>, vector<1x16x128xf32>
    %16 = vector.shape_cast %15 : vector<1x16x128xf32> to vector<16x128xf32>
    %c16_22 = arith.constant 16 : index
    %c256_23 = arith.constant 256 : index
    %17 = vector.load %arg6[%c16_22, %c256_23] : memref<32x384xf32, #tpu.memory_space<vmem>>, vector<16x128xf32>
    tpu.vector_store %arg6[%c16_22, %c256_23], %16 {strides = array<i32>} : memref<32x384xf32, #tpu.memory_space<vmem>>, vector<16x128xf32>,
    %c0_24 = arith.constant 0 : index
    %c0_25 = arith.constant 0 : index
    %18 = vector.load %arg6[%c0_24, %c0_25] : memref<32x384xf32, #tpu.memory_space<vmem>>, vector<32x384xf32>
    %c0_26 = arith.constant 0 : index
    %c0_27 = arith.constant 0 : index
    %19 = vector.load %arg2[%c0_26, %c0_27] : memref<384x128xf32, #tpu.memory_space<vmem>>, vector<384x128xf32>
    %cst = arith.constant dense<0.000000e+00> : vector<32x128xf32>
    %20 = tpu.matmul %18, %19, %cst {dimension_numbers = #tpu.dot_dimension_numbers<[1], [0], [0], [1], [0, 0, 1, 1], [], []>} : vector<32x384xf32>, vector<384x128xf32>, vector<32x128xf32> -> vector<32x128xf32>
    %c0_28 = arith.constant 0 : index
    %c0_29 = arith.constant 0 : index
    %21 = vector.load %arg3[%c0_28, %c0_29] : memref<1x128xf32, #tpu.memory_space<vmem>>, vector<1x128xf32>
    %22 = vector.broadcast %21 : vector<1x128xf32> to vector<32x128xf32>
    %23 = arith.addf %20, %22 : vector<32x128xf32>
    %cst_30 = arith.constant 0.000000e+00 : f32
    %24 = vector.broadcast %cst_30 : f32 to vector<32x128xf32>
    %25 = arith.cmpf ogt, %23, %24 : vector<32x128xf32>
    %c0_31 = arith.constant 0 : index
    %c0_32 = arith.constant 0 : index
    %26 = vector.load %arg4[%c0_31, %c0_32] : memref<1x1xf32, #tpu.memory_space<vmem>>, vector<1x1xf32>
    %27 = vector.broadcast %26 : vector<1x1xf32> to vector<32x128xf32>
    %28 = arith.mulf %27, %23 : vector<32x128xf32>
    %29 = arith.select %25, %23, %28 : vector<32x128xi1>, vector<32x128xf32>
    %c0_33 = arith.constant 0 : index
    %c0_34 = arith.constant 0 : index
    %30 = vector.load %arg5[%c0_33, %c0_34] : memref<32x128xf32, #tpu.memory_space<vmem>>, vector<32x128xf32>
    tpu.vector_store %arg5[%c0_33, %c0_34], %29 {strides = array<i32>} : memref<32x128xf32, #tpu.memory_space<vmem>>, vector<32x128xf32>,
    return
  }
  func.func @transform_0(%arg0: i32) -> (i32, i32, i32) {
    %c0_i32 = arith.constant 0 : i32
    %c0_i32_0 = arith.constant 0 : i32
    %c0_i32_1 = arith.constant 0 : i32
    return %arg0, %c0_i32, %c0_i32_0 : i32, i32, i32
  }
  func.func @transform_1(%arg0: i32) -> (i32, i32) {
    %c0_i32 = arith.constant 0 : i32
    %c0_i32_0 = arith.constant 0 : i32
    %c0_i32_1 = arith.constant 0 : i32
    return %c0_i32, %c0_i32_0 : i32, i32
  }
  func.func @transform_2(%arg0: i32) -> (i32, i32) {
    %c0_i32 = arith.constant 0 : i32
    %c0_i32_0 = arith.constant 0 : i32
    %c0_i32_1 = arith.constant 0 : i32
    return %c0_i32, %c0_i32_0 : i32, i32
  }
  func.func @transform_3(%arg0: i32) -> (i32, i32) {
    %c0_i32 = arith.constant 0 : i32
    %c0_i32_0 = arith.constant 0 : i32
    %c0_i32_1 = arith.constant 0 : i32
    return %c0_i32, %c0_i32_0 : i32, i32
  }
  func.func @transform_4(%arg0: i32) -> (i32, i32) {
    %c0_i32 = arith.constant 0 : i32
    %c0_i32_0 = arith.constant 0 : i32
    return %arg0, %c0_i32 : i32, i32
  }
}

</mosaic_0001>

<llo_original>
// kernel: forward.1
$region0: #{forward.1}
  #allocation0 [shape = 'u32[]', space=smem, size = 0x4, offset = 0x4, fixed_abs, tag = 'smem constant byte address 0x4 - core index']
  #allocation1 [shape = 'u32[144,128]{1,0:T(1,128)}', space=vmem, size = 0x12000, scoped, tag = 'internal scratch']
  #allocation2 [shape = 'f32[32,384]{1,0:T(8,128)}', space=vmem, size = 0xc000, scoped, tag = 'scratch operand']
  #allocation3 [shape = 'f32[1,1]{1,0:T(1,128)S(1)}', space=vmem, size = 0x200, scoped, tag = 'scoped memory for forward.1']
  %s0 = inlined_call_operand.vmem [shape: f32[2,18,128], index: 0, kind: input, shape index: {}]
  %s1 = inlined_call_operand.vmem [shape: f32[384,128], index: 1, kind: input, shape index: {}]
  %s2 = inlined_call_operand.vmem [shape: f32[1,128], index: 2, kind: input, shape index: {}]
  %s3 = inlined_call_operand.<no memory space> [shape: f32[1,1], index: 3, kind: input, shape index: {}]
  %s4 = inlined_call_operand.vmem [shape: f32[32,128], index: 4, kind: output, shape index: {}]
  %s5 = sld [smem:[#allocation0]]
  $region26: #{forward.1} parent=0
    _
  %s7 = ssub.s32 1, %s5
  %s8 = scalar_select 0, %s7, %s5
  %v9 = vstv %s3
  %10 = vst [vmem:[#allocation3] sm:$0x1] %v9
  // Predicated region
  $region2: #{forward.1} parent=0 // pred_check
    _
  $region3: #{forward.1} parent=0 // pred_check_branch
    %12 = sbr.rel (0) target = $region5
  $region4: #{forward.1} parent=0 // pred_region
    _
  $region5: #{forward.1} parent=0 // pred_fallthru
    _
  // Predicated region
  $region6: #{forward.1} parent=0 // pred_check
    _
  $region7: #{forward.1} parent=0 // pred_check_branch
    %14 = sbr.rel (0) target = $region9
  $region8: #{forward.1} parent=0 // pred_region
    _
  $region9: #{forward.1} parent=0 // pred_fallthru
    _
  // Predicated region
  $region10: #{forward.1} parent=0 // pred_check
    _
  $region11: #{forward.1} parent=0 // pred_check_branch
    %16 = sbr.rel (0) target = $region13
  $region12: #{forward.1} parent=0 // pred_region
    _
  $region13: #{forward.1} parent=0 // pred_fallthru
    _
  // Predicated region
  $region14: #{forward.1} parent=0 // pred_check
    _
  $region15: #{forward.1} parent=0 // pred_check_branch
    %18 = sbr.rel (0) target = $region17
  $region16: #{forward.1} parent=0 // pred_region
    _
  $region17: #{forward.1} parent=0 // pred_fallthru
    _
  %v19 = vld [vmem:[%s0] sm:$0xff]
  %v20 = vld [vmem:[%s0 + $0x8] sm:$0xff]
  %21 = vst [vmem:[#allocation2] sm:$0xff] %v19
  %22 = vst [vmem:[#allocation2 + $0x18] sm:$0xff] %v20
  %v23 = vld [vmem:[%s0 + $0x1] sm:$0xff]
  %v24 = vld [vmem:[%s0 + $0x9] sm:$0xff]
  %25 = vst [vmem:[#allocation2 + $0x8] sm:$0xff] %v23
  %26 = vst [vmem:[#allocation2 + $0x20] sm:$0xff] %v24
  %v27 = vld [vmem:[%s0 + $0x2] sm:$0xff]
  %v28 = vld [vmem:[%s0 + $0xa] sm:$0xff]
  %29 = vst [vmem:[#allocation2 + $0x10] sm:$0xff] %v27
  %30 = vst [vmem:[#allocation2 + $0x28] sm:$0xff] %v28
  %s31 = scalar_lea.vmem %s0, 24
  %v32 = vld [vmem:[%s31] sm:$0xff]
  %v33 = vld [vmem:[%s31 + $0x8] sm:$0xff]
  %34 = vst [vmem:[#allocation2 + $0x30] sm:$0xff] %v32
  %35 = vst [vmem:[#allocation2 + $0x48] sm:$0xff] %v33
  %v36 = vld [vmem:[%s31 + $0x1] sm:$0xff]
  %v37 = vld [vmem:[%s31 + $0x9] sm:$0xff]
  %38 = vst [vmem:[#allocation2 + $0x38] sm:$0xff] %v36
  %39 = vst [vmem:[#allocation2 + $0x50] sm:$0xff] %v37
  %v40 = vld [vmem:[%s31 + $0x2] sm:$0xff]
  %v41 = vld [vmem:[%s31 + $0xa] sm:$0xff]
  %42 = vst [vmem:[#allocation2 + $0x40] sm:$0xff] %v40
  %43 = vst [vmem:[#allocation2 + $0x58] sm:$0xff] %v41
  %v44 = vld [vmem:[#allocation2] sm:$0xff]
  %v45 = vld [vmem:[#allocation2 + $0x8] sm:$0xff]
  %v46 = vld [vmem:[#allocation2 + $0x10] sm:$0xff]
  %v47 = vld [vmem:[#allocation2 + $0x18] sm:$0xff]
  %v48 = vld [vmem:[#allocation2 + $0x20] sm:$0xff]
  %v49 = vld [vmem:[#allocation2 + $0x28] sm:$0xff]
  %v50 = vld [vmem:[#allocation2 + $0x30] sm:$0xff]
  %v51 = vld [vmem:[#allocation2 + $0x38] sm:$0xff]
  %v52 = vld [vmem:[#allocation2 + $0x40] sm:$0xff]
  %v53 = vld [vmem:[#allocation2 + $0x48] sm:$0xff]
  %v54 = vld [vmem:[#allocation2 + $0x50] sm:$0xff]
  %v55 = vld [vmem:[#allocation2 + $0x58] sm:$0xff]
  %v56 = vld [vmem:[%s1] sm:$0xff]
  %v57 = vld [vmem:[%s1 + $0x8] sm:$0xff]
  %v58 = vld [vmem:[%s1 + $0x10] sm:$0xff]
  %v59 = vld [vmem:[%s1 + $0x18] sm:$0xff]
  %v60 = vld [vmem:[%s1 + $0x20] sm:$0xff]
  %v61 = vld [vmem:[%s1 + $0x28] sm:$0xff]
  %v62 = vld [vmem:[%s1 + $0x30] sm:$0xff]
  %v63 = vld [vmem:[%s1 + $0x38] sm:$0xff]
  %v64 = vld [vmem:[%s1 + $0x40] sm:$0xff]
  %v65 = vld [vmem:[%s1 + $0x48] sm:$0xff]
  %v66 = vld [vmem:[%s1 + $0x50] sm:$0xff]
  %v67 = vld [vmem:[%s1 + $0x58] sm:$0xff]
  %v68 = vld [vmem:[%s1 + $0x60] sm:$0xff]
  %v69 = vld [vmem:[%s1 + $0x68] sm:$0xff]
  %v70 = vld [vmem:[%s1 + $0x70] sm:$0xff]
  %v71 = vld [vmem:[%s1 + $0x78] sm:$0xff]
  %v72 = vld [vmem:[%s1 + $0x80] sm:$0xff]
  %v73 = vld [vmem:[%s1 + $0x88] sm:$0xff]
  %v74 = vld [vmem:[%s1 + $0x90] sm:$0xff]
  %v75 = vld [vmem:[%s1 + $0x98] sm:$0xff]
  %v76 = vld [vmem:[%s1 + $0xa0] sm:$0xff]
  %v77 = vld [vmem:[%s1 + $0xa8] sm:$0xff]
  %v78 = vld [vmem:[%s1 + $0xb0] sm:$0xff]
  %v79 = vld [vmem:[%s1 + $0xb8] sm:$0xff]
  %v80 = vld [vmem:[%s1 + $0xc0] sm:$0xff]
  %v81 = vld [vmem:[%s1 + $0xc8] sm:$0xff]
  %v82 = vld [vmem:[%s1 + $0xd0] sm:$0xff]
  %v83 = vld [vmem:[%s1 + $0xd8] sm:$0xff]
  %v84 = vld [vmem:[%s1 + $0xe0] sm:$0xff]
  %v85 = vld [vmem:[%s1 + $0xe8] sm:$0xff]
  %v86 = vld [vmem:[%s1 + $0xf0] sm:$0xff]
  %v87 = vld [vmem:[%s1 + $0xf8] sm:$0xff]
  %v88 = vld [vmem:[%s1 + $0x100] sm:$0xff]
  %v89 = vld [vmem:[%s1 + $0x108] sm:$0xff]
  %v90 = vld [vmem:[%s1 + $0x110] sm:$0xff]
  %v91 = vld [vmem:[%s1 + $0x118] sm:$0xff]
  %v92 = vld [vmem:[%s1 + $0x120] sm:$0xff]
  %v93 = vld [vmem:[%s1 + $0x128] sm:$0xff]
  %v94 = vld [vmem:[%s1 + $0x130] sm:$0xff]
  %v95 = vld [vmem:[%s1 + $0x138] sm:$0xff]
  %v96 = vld [vmem:[%s1 + $0x140] sm:$0xff]
  %v97 = vld [vmem:[%s1 + $0x148] sm:$0xff]
  %v98 = vld [vmem:[%s1 + $0x150] sm:$0xff]
  %v99 = vld [vmem:[%s1 + $0x158] sm:$0xff]
  %v100 = vld [vmem:[%s1 + $0x160] sm:$0xff]
  %v101 = vld [vmem:[%s1 + $0x168] sm:$0xff]
  %v102 = vld [vmem:[%s1 + $0x170] sm:$0xff]
  %v103 = vld [vmem:[%s1 + $0x178] sm:$0xff]
  %v104 = vld [vmem:[%s2] sm:$0x1]
  %v106 = vlaneseq
  %v107 = vshrl.u32 %v106, 7
  %v108 = vsub.s32 0, %v107
  %v109 = vrot.slane %v104, %v108
  %111 = vmatprep.subr.mxu0 0.0
  %112 = vmatpush1.msra.mxu0 %v56
  %113 = vmatprep.subr.mxu0 0.0
  %114 = vmatpush1.msra.mxu0 %v57
  %115 = vmatprep.subr.mxu0 0.0
  %116 = vmatpush1.msra.mxu0 %v58
  %117 = vmatprep.subr.mxu0 0.0
  %118 = vmatpush1.msra.mxu0 %v59
  %119 = vmatprep.subr.mxu0 0.0
  %120 = vmatpush1.msra.mxu0 %v60
  %121 = vmatprep.subr.mxu0 0.0
  %122 = vmatpush1.msra.mxu0 %v61
  %123 = vmatprep.subr.mxu0 0.0
  %124 = vmatpush1.msra.mxu0 %v62
  %125 = vmatprep.subr.mxu0 0.0
  %126 = vmatpush1.msra.mxu0 %v63
  %127 = vmatprep.subr.mxu0 0.0
  %128 = vmatpush1.msra.mxu0 %v64
  %129 = vmatprep.subr.mxu0 0.0
  %130 = vmatpush1.msra.mxu0 %v65
  %131 = vmatprep.subr.mxu0 0.0
  %132 = vmatpush1.msra.mxu0 %v66
  %133 = vmatprep.subr.mxu0 0.0
  %134 = vmatpush1.msra.mxu0 %v67
  %135 = vmatprep.subr.mxu0 0.0
  %136 = vmatpush1.msra.mxu0 %v68
  %137 = vmatprep.subr.mxu0 0.0
  %138 = vmatpush1.msra.mxu0 %v69
  %139 = vmatprep.subr.mxu0 0.0
  %140 = vmatpush1.msra.mxu0 %v70
  %141 = vmatprep.subr.mxu0 0.0
  %142 = vmatpush1.msra.mxu0 %v71
  %143 = vmatprep.subr.mxu0 0.0
  %144 = vmatpush1.msra.mxu0 %v72
  %145 = vmatprep.subr.mxu0 0.0
  %146 = vmatpush1.msra.mxu0 %v73
  %147 = vmatprep.subr.mxu0 0.0
  %148 = vmatpush1.msra.mxu0 %v74
  %149 = vmatprep.subr.mxu0 0.0
  %150 = vmatpush1.msra.mxu0 %v75
  %151 = vmatprep.subr.mxu0 0.0
  %152 = vmatpush1.msra.mxu0 %v76
  %153 = vmatprep.subr.mxu0 0.0
  %154 = vmatpush1.msra.mxu0 %v77
  %155 = vmatprep.subr.mxu0 0.0
  %156 = vmatpush1.msra.mxu0 %v78
  %157 = vmatprep.subr.mxu0 0.0
  %158 = vmatpush1.msra.mxu0 %v79
  %159 = vmatprep.subr.mxu0 0.0
  %160 = vmatpush1.msra.mxu0 %v80
  %161 = vmatprep.subr.mxu0 0.0
  %162 = vmatpush1.msra.mxu0 %v81
  %163 = vmatprep.subr.mxu0 0.0
  %164 = vmatpush1.msra.mxu0 %v82
  %165 = vmatprep.subr.mxu0 0.0
  %166 = vmatpush1.msra.mxu0 %v83
  %167 = vmatprep.subr.mxu0 0.0
  %168 = vmatpush1.msra.mxu0 %v84
  %169 = vmatprep.subr.mxu0 0.0
  %170 = vmatpush1.msra.mxu0 %v85
  %171 = vmatprep.subr.mxu0 0.0
  %172 = vmatpush1.msra.mxu0 %v86
  %173 = vmatprep.subr.mxu0 0.0
  %174 = vmatpush1.msra.mxu0 %v87
  %175 = vmatprep.mubr.f32.mxu0 %v45
  %176 = vmatmul.mubr.f32.gmra.mrb[0].mxu0 %v44
  %v177 = vpop.f32.mrb[0].mxu0
  %v178 = vadd.f32 %v109, %v177
  %v179 = vpop.f32.mrb[0].mxu0
  %180 = vmatprep.mubr.f32.mxu0 %v48
  %181 = vmatmul.mubr.f32.gmra.mrb[0].mxu0 %v47
  %v182 = vpop.f32.mrb[0].mxu0
  %v183 = vadd.f32 %v109, %v182
  %v184 = vpop.f32.mrb[0].mxu0
  %185 = vmatprep.mubr.f32.mxu0 %v51
  %186 = vmatmul.mubr.f32.gmra.mrb[0].mxu0 %v50
  %v187 = vpop.f32.mrb[0].mxu0
  %v188 = vadd.f32 %v109, %v187
  %v189 = vpop.f32.mrb[0].mxu0
  %190 = vmatprep.mubr.f32.mxu0 %v54
  %191 = vmatmul.mubr.f32.gmra.mrb[0].mxu0 %v53
  %v192 = vpop.f32.mrb[0].mxu0
  %v193 = vadd.f32 %v109, %v192
  %v194 = vpop.f32.mrb[0].mxu0
  %195 = vdwg.mxu0
  %196 = vmatprep.subr.mxu0 0.0
  %197 = vmatpush1.msra.mxu0 %v88
  %198 = vmatprep.subr.mxu0 0.0
  %199 = vmatpush1.msra.mxu0 %v89
  %200 = vmatprep.subr.mxu0 0.0
  %201 = vmatpush1.msra.mxu0 %v90
  %202 = vmatprep.subr.mxu0 0.0
  %203 = vmatpush1.msra.mxu0 %v91
  %204 = vmatprep.subr.mxu0 0.0
  %205 = vmatpush1.msra.mxu0 %v92
  %206 = vmatprep.subr.mxu0 0.0
  %207 = vmatpush1.msra.mxu0 %v93
  %208 = vmatprep.subr.mxu0 0.0
  %209 = vmatpush1.msra.mxu0 %v94
  %210 = vmatprep.subr.mxu0 0.0
  %211 = vmatpush1.msra.mxu0 %v95
  %212 = vmatprep.subr.mxu0 0.0
  %213 = vmatpush1.msra.mxu0 %v96
  %214 = vmatprep.subr.mxu0 0.0
  %215 = vmatpush1.msra.mxu0 %v97
  %216 = vmatprep.subr.mxu0 0.0
  %217 = vmatpush1.msra.mxu0 %v98
  %218 = vmatprep.subr.mxu0 0.0
  %219 = vmatpush1.msra.mxu0 %v99
  %220 = vmatprep.subr.mxu0 0.0
  %221 = vmatpush1.msra.mxu0 %v100
  %222 = vmatprep.subr.mxu0 0.0
  %223 = vmatpush1.msra.mxu0 %v101
  %224 = vmatprep.subr.mxu0 0.0
  %225 = vmatpush1.msra.mxu0 %v102
  %226 = vmatprep.subr.mxu0 0.0
  %227 = vmatpush1.msra.mxu0 %v103
  %228 = vmatprep.subr.mxu0 0.0
  %229 = vmatpush1.msra.mxu0 0.0
  %230 = vmatprep.subr.mxu0 0.0
  %231 = vmatpush1.msra.mxu0 0.0
  %232 = vmatprep.subr.mxu0 0.0
  %233 = vmatpush1.msra.mxu0 0.0
  %234 = vmatprep.subr.mxu0 0.0
  %235 = vmatpush1.msra.mxu0 0.0
  %236 = vmatprep.subr.mxu0 0.0
  %237 = vmatpush1.msra.mxu0 0.0
  %238 = vmatprep.subr.mxu0 0.0
  %239 = vmatpush1.msra.mxu0 0.0
  %240 = vmatprep.subr.mxu0 0.0
  %241 = vmatpush1.msra.mxu0 0.0
  %242 = vmatprep.subr.mxu0 0.0
  %243 = vmatpush1.msra.mxu0 0.0
  %244 = vmatprep.subr.mxu0 0.0
  %245 = vmatpush1.msra.mxu0 0.0
  %246 = vmatprep.subr.mxu0 0.0
  %247 = vmatpush1.msra.mxu0 0.0
  %248 = vmatprep.subr.mxu0 0.0
  %249 = vmatpush1.msra.mxu0 0.0
  %250 = vmatprep.subr.mxu0 0.0
  %251 = vmatpush1.msra.mxu0 0.0
  %252 = vmatprep.subr.mxu0 0.0
  %253 = vmatpush1.msra.mxu0 0.0
  %254 = vmatprep.subr.mxu0 0.0
  %255 = vmatpush1.msra.mxu0 0.0
  %256 = vmatprep.subr.mxu0 0.0
  %257 = vmatpush1.msra.mxu0 0.0
  %258 = vmatprep.subr.mxu0 0.0
  %259 = vmatpush1.msra.mxu0 0.0
  %260 = vmatprep.mubr.f32.mxu0 0.0
  %261 = vmatmul.mubr.f32.gmra.mrb[0].mxu0 %v46
  %v262 = vpop.f32.mrb[0].mxu0
  %v263 = vadd.f32 %v178, %v262
  %v264 = vpop.f32.mrb[0].mxu0
  %265 = vmatprep.mubr.f32.mxu0 0.0
  %266 = vmatmul.mubr.f32.gmra.mrb[0].mxu0 %v49
  %v267 = vpop.f32.mrb[0].mxu0
  %v268 = vadd.f32 %v183, %v267
  %v269 = vpop.f32.mrb[0].mxu0
  %270 = vmatprep.mubr.f32.mxu0 0.0
  %271 = vmatmul.mubr.f32.gmra.mrb[0].mxu0 %v52
  %v272 = vpop.f32.mrb[0].mxu0
  %v273 = vadd.f32 %v188, %v272
  %v274 = vpop.f32.mrb[0].mxu0
  %275 = vmatprep.mubr.f32.mxu0 0.0
  %276 = vmatmul.mubr.f32.gmra.mrb[0].mxu0 %v55
  %v277 = vpop.f32.mrb[0].mxu0
  %v278 = vadd.f32 %v193, %v277
  %v279 = vpop.f32.mrb[0].mxu0
  %280 = vdwg.mxu0
  %vm281 = vcmp.gt.f32.partialorder %v263, 0.0
  %vm282 = vcmp.gt.f32.partialorder %v268, 0.0
  %vm283 = vcmp.gt.f32.partialorder %v273, 0.0
  %vm284 = vcmp.gt.f32.partialorder %v278, 0.0
  %v285 = vld [vmem:[#allocation3] sm:$0x1]
  %v287 = vlaneseq
  %v288 = vshrl.u32 %v287, 7
  %v289 = vsub.s32 0, %v288
  %v290 = vrot.slane %v285, %v289
  %291 = vset.pattern.permute.xlu0 0
  %292 = vperm.xlu0 %291, %v290
  %v293 = vpop.permute.xlu0 %292
  %v295 = vmul.f32 %v293, %v263
  %v296 = vmul.f32 %v293, %v268
  %v297 = vmul.f32 %v293, %v273
  %v298 = vmul.f32 %v293, %v278
  %v299 = vsel %vm281, %v263, %v295
  %v300 = vsel %vm282, %v268, %v296
  %v301 = vsel %vm283, %v273, %v297
  %v302 = vsel %vm284, %v278, %v298
  %303 = vst [vmem:[%s4] sm:$0xff] %v299
  %304 = vst [vmem:[%s4 + $0x8] sm:$0xff] %v300
  %305 = vst [vmem:[%s4 + $0x10] sm:$0xff] %v301
  %306 = vst [vmem:[%s4 + $0x18] sm:$0xff] %v302
  // Predicated region
  $region18: #{forward.1} parent=0 // pred_check
    _
  $region19: #{forward.1} parent=0 // pred_check_branch
    %308 = sbr.rel (0) target = $region21
  $region20: #{forward.1} parent=0 // pred_region
    _
  $region21: #{forward.1} parent=0 // pred_fallthru
    _
  // Predicated region
  $region22: #{forward.1} parent=0 // pred_check
    _
  $region23: #{forward.1} parent=0 // pred_check_branch
    %310 = sbr.rel (0) target = $region25
  $region24: #{forward.1} parent=0 // pred_region
    _
  $region25: #{forward.1} parent=0 // pred_fallthru
    _

</llo_original>
